<compile_context>
chip_gen: v6e
topology: v6e:2x2x1
jax: 0.10.0
libtpu: 0.0.40
codegen_flags: <defaults>
</compile_context>

<pallas_src>
import jax
import jax.numpy as jnp
from jax.experimental import pallas as pl
from jax.experimental.pallas import tpu as pltpu

INPUTS_UNITS = 512   # fc1_units
OUTPUTS_UNITS = 384  # fc2_units

TILE_B_MAX = 256     # MXU-friendly batch tile (256 rows on v6e/v7x, fine on v5e)


def _round_up(x, m):
    return ((x + m - 1) // m) * m


def _actor_kernel(x_ref, w1_ref, b1_ref, w2_ref, b2_ref, w3_ref, b3_ref, o_ref):
    """Fused MLP: relu(x@W1+b1) -> relu(.@W2+b2) -> tanh(.@W3+b3).

    x_ref / w*_ref hold bf16 matmul operands; accumulation and all
    elementwise work (bias, ReLU, tanh) are f32.
    """
    x = x_ref[...]                                            # [tb, S_pad] bf16

    h1 = jnp.dot(x, w1_ref[...],
                 preferred_element_type=jnp.float32) + b1_ref[...]
    h1 = jnp.maximum(h1, 0.0)                                 # f32 [tb, 512]

    h2 = jnp.dot(h1.astype(w2_ref.dtype), w2_ref[...],
                 preferred_element_type=jnp.float32) + b2_ref[...]
    h2 = jnp.maximum(h2, 0.0)                                 # f32 [tb, 384]

    h3 = jnp.dot(h2.astype(w3_ref.dtype), w3_ref[...],
                 preferred_element_type=jnp.float32) + b3_ref[...]
    o_ref[...] = jnp.tanh(h3).astype(o_ref.dtype)             # [tb, A_pad]


def actor_forward(state, params, *, tile_b_max=TILE_B_MAX,
                  compute_dtype=jnp.bfloat16):
    """state: [B, state_size] -> actions: [B, action_size] f32."""
    w1, b1 = params["w1"], params["b1"]
    w2, b2 = params["w2"], params["b2"]
    w3, b3 = params["w3"], params["b3"]

    B, S = state.shape
    fc1 = w1.shape[1]
    fc2 = w2.shape[1]
    action_size = w3.shape[1]

    # Lane-dense padding of the tiny K (state) and N (action) dims.
    S_pad = _round_up(S, 128)
    A_pad = _round_up(action_size, 128)

    # Batch tiling: multiple of 8 sublanes, capped at tile_b_max.
    tile_b = min(tile_b_max, _round_up(B, 8))
    B_pad = _round_up(B, tile_b)
    n_tiles = B_pad // tile_b

    # --- wrapper-side prep: zero-pad + cast matmul operands to bf16 ---------
    state_p = (jnp.zeros((B_pad, S_pad), compute_dtype)
               .at[:B, :S].set(state.astype(compute_dtype)))
    w1_p = (jnp.zeros((S_pad, fc1), compute_dtype)
            .at[:S, :].set(w1.astype(compute_dtype)))
    w2_c = w2.astype(compute_dtype)
    w3_p = (jnp.zeros((fc2, A_pad), compute_dtype)
            .at[:, :action_size].set(w3.astype(compute_dtype)))
    b1_f = b1.astype(jnp.float32)
    b2_f = b2.astype(jnp.float32)
    b3_p = (jnp.zeros((1, A_pad), jnp.float32)
            .at[:, :action_size].set(b3.astype(jnp.float32)))

    out_padded = pl.pallas_call(
        _actor_kernel,
        out_shape=jax.ShapeDtypeStruct((B_pad, A_pad), jnp.float32),
        grid=(n_tiles,),
        in_specs=[
            # batch-tiled activations
            pl.BlockSpec((tile_b, S_pad), lambda i: (i, 0)),
            # weights / biases: same block every step -> VMEM-resident
            pl.BlockSpec((S_pad, fc1), lambda i: (0, 0)),
            pl.BlockSpec((1, fc1), lambda i: (0, 0)),
            pl.BlockSpec((fc1, fc2), lambda i: (0, 0)),
            pl.BlockSpec((1, fc2), lambda i: (0, 0)),
            pl.BlockSpec((fc2, A_pad), lambda i: (0, 0)),
            pl.BlockSpec((1, A_pad), lambda i: (0, 0)),
        ],
        out_specs=pl.BlockSpec((tile_b, A_pad), lambda i: (i, 0)),
        compiler_params=pltpu.CompilerParams(
            dimension_semantics=("parallel",),
            vmem_limit_bytes=16 << 20,
        ),
    )(state_p, w1_p, b1_f, w2_c, b2_f, w3_p, b3_p)

    return out_padded[:B, :action_size]


def init_actor_params(key, state_size, action_size,
                      fc1_units=INPUTS_UNITS, fc2_units=OUTPUTS_UNITS):
    """Deterministic init mirroring the PyTorch module's reset_parameters.

    PyTorch's hidden_init uses weight.size()[0] (== out_features) for the fan;
    we reproduce that exact convention for the weight ranges.  Biases keep the
    default nn.Linear uniform(-1/sqrt(in_features), 1/sqrt(in_features)).
    Weights are stored already transposed as [in_features, out_features].
    """
    ks = jax.random.split(key, 6)

    def uni(k, shape, lim):
        return jax.random.uniform(k, shape, jnp.float32, -lim, lim)

    lim1 = 1.0 / jnp.sqrt(jnp.float32(fc1_units))   # hidden_init(fc1)
    lim2 = 1.0 / jnp.sqrt(jnp.float32(fc2_units))   # hidden_init(fc2)
    lim3 = 3e-3

    return {
        "w1": uni(ks[0], (state_size, fc1_units), lim1),
        "b1": uni(ks[1], (1, fc1_units), 1.0 / jnp.sqrt(jnp.float32(state_size))),
        "w2": uni(ks[2], (fc1_units, fc2_units), lim2),
        "b2": uni(ks[3], (1, fc2_units), 1.0 / jnp.sqrt(jnp.float32(fc1_units))),
        "w3": uni(ks[4], (fc2_units, action_size), lim3),
        "b3": uni(ks[5], (1, action_size), 1.0 / jnp.sqrt(jnp.float32(fc2_units))),
    }


def actor_reference(state, params):
    """Pure-JAX f32 reference of the PyTorch forward for correctness check."""
    h1 = jnp.maximum(state @ params["w1"] + params["b1"], 0.0)
    h2 = jnp.maximum(h1 @ params["w2"] + params["b2"], 0.0)
    return jnp.tanh(h2 @ params["w3"] + params["b3"])


if __name__ == "__main__":
    key = jax.random.PRNGKey(0)
    k_params, k_state = jax.random.split(key)

    batch = 8
    state_size = 16
    action_size = 4

    params = init_actor_params(k_params, state_size, action_size)
    state = jax.random.normal(k_state, (batch, state_size), jnp.float32)

    out = actor_forward(state, params)
    out = jax.block_until_ready(out)

    ref = actor_reference(state, params)
    assert out.shape == (batch, action_size)
    # bf16 matmul operands with f32 accumulation -> loosened tolerance vs the
    # pure-f32 reference.
    assert jnp.allclose(out, ref, atol=2e-2, rtol=2e-2), (
        f"max abs err {jnp.max(jnp.abs(out - ref))}")

    print("KERNEL_OK")
</pallas_src>

<mosaic_0001>
module attributes {stable_mosaic.version = 11 : i64} {
  func.func @_actor_kernel(%arg0: i32, %arg1: memref<8x128xbf16, #tpu.memory_space<vmem>>, %arg2: memref<128x512xbf16, #tpu.memory_space<vmem>>, %arg3: memref<1x512xf32, #tpu.memory_space<vmem>>, %arg4: memref<512x384xbf16, #tpu.memory_space<vmem>>, %arg5: memref<1x384xf32, #tpu.memory_space<vmem>>, %arg6: memref<384x128xbf16, #tpu.memory_space<vmem>>, %arg7: memref<1x128xf32, #tpu.memory_space<vmem>>, %arg8: memref<8x128xf32, #tpu.memory_space<vmem>>) attributes {dimension_semantics = [#tpu.dimension_semantics<parallel>], iteration_bounds = array<i64: 1>, scalar_prefetch = 0 : i64, scratch_operands = 0 : i64, tpu.core_type = #tpu.core_type<tc>, window_params = [{transform_indices = @transform_0, window_bounds = array<i64: 8, 128>}, {pipeline_mode = #tpu.pipeline_mode<synchronous>, transform_indices = @transform_1, window_bounds = array<i64: 128, 512>}, {pipeline_mode = #tpu.pipeline_mode<synchronous>, transform_indices = @transform_2, window_bounds = array<i64: 1, 512>}, {pipeline_mode = #tpu.pipeline_mode<synchronous>, transform_indices = @transform_3, window_bounds = array<i64: 512, 384>}, {pipeline_mode = #tpu.pipeline_mode<synchronous>, transform_indices = @transform_4, window_bounds = array<i64: 1, 384>}, {pipeline_mode = #tpu.pipeline_mode<synchronous>, transform_indices = @transform_5, window_bounds = array<i64: 384, 128>}, {pipeline_mode = #tpu.pipeline_mode<synchronous>, transform_indices = @transform_6, window_bounds = array<i64: 1, 128>}, {transform_indices = @transform_7, window_bounds = array<i64: 8, 128>}]} {
    %c0 = arith.constant 0 : index
    %c0_0 = arith.constant 0 : index
    %0 = vector.load %arg1[%c0, %c0_0] : memref<8x128xbf16, #tpu.memory_space<vmem>>, vector<8x128xbf16>
    %c0_1 = arith.constant 0 : index
    %c0_2 = arith.constant 0 : index
    %1 = vector.load %arg2[%c0_1, %c0_2] : memref<128x512xbf16, #tpu.memory_space<vmem>>, vector<128x512xbf16>
    %cst = arith.constant dense<0.000000e+00> : vector<8x512xf32>
    %2 = tpu.matmul %0, %1, %cst {dimension_numbers = #tpu.dot_dimension_numbers<[1], [0], [0], [1], [0, 0, 1, 1], [], []>} : vector<8x128xbf16>, vector<128x512xbf16>, vector<8x512xf32> -> vector<8x512xf32>
    %c0_3 = arith.constant 0 : index
    %c0_4 = arith.constant 0 : index
    %3 = vector.load %arg3[%c0_3, %c0_4] : memref<1x512xf32, #tpu.memory_space<vmem>>, vector<1x512xf32>
    %4 = vector.broadcast %3 : vector<1x512xf32> to vector<8x512xf32>
    %5 = arith.addf %2, %4 : vector<8x512xf32>
    %cst_5 = arith.constant 0.000000e+00 : f32
    %6 = vector.broadcast %cst_5 : f32 to vector<8x512xf32>
    %7 = arith.maximumf %5, %6 : vector<8x512xf32>
    %8 = arith.truncf %7 : vector<8x512xf32> to vector<8x512xbf16>
    %c0_6 = arith.constant 0 : index
    %c0_7 = arith.constant 0 : index
    %9 = vector.load %arg4[%c0_6, %c0_7] : memref<512x384xbf16, #tpu.memory_space<vmem>>, vector<512x384xbf16>
    %cst_8 = arith.constant dense<0.000000e+00> : vector<8x384xf32>
    %10 = tpu.matmul %8, %9, %cst_8 {dimension_numbers = #tpu.dot_dimension_numbers<[1], [0], [0], [1], [0, 0, 1, 1], [], []>} : vector<8x512xbf16>, vector<512x384xbf16>, vector<8x384xf32> -> vector<8x384xf32>
    %c0_9 = arith.constant 0 : index
    %c0_10 = arith.constant 0 : index
    %11 = vector.load %arg5[%c0_9, %c0_10] : memref<1x384xf32, #tpu.memory_space<vmem>>, vector<1x384xf32>
    %12 = vector.broadcast %11 : vector<1x384xf32> to vector<8x384xf32>
    %13 = arith.addf %10, %12 : vector<8x384xf32>
    %cst_11 = arith.constant 0.000000e+00 : f32
    %14 = vector.broadcast %cst_11 : f32 to vector<8x384xf32>
    %15 = arith.maximumf %13, %14 : vector<8x384xf32>
    %16 = arith.truncf %15 : vector<8x384xf32> to vector<8x384xbf16>
    %c0_12 = arith.constant 0 : index
    %c0_13 = arith.constant 0 : index
    %17 = vector.load %arg6[%c0_12, %c0_13] : memref<384x128xbf16, #tpu.memory_space<vmem>>, vector<384x128xbf16>
    %cst_14 = arith.constant dense<0.000000e+00> : vector<8x128xf32>
    %18 = tpu.matmul %16, %17, %cst_14 {dimension_numbers = #tpu.dot_dimension_numbers<[1], [0], [0], [1], [0, 0, 1, 1], [], []>} : vector<8x384xbf16>, vector<384x128xbf16>, vector<8x128xf32> -> vector<8x128xf32>
    %c0_15 = arith.constant 0 : index
    %c0_16 = arith.constant 0 : index
    %19 = vector.load %arg7[%c0_15, %c0_16] : memref<1x128xf32, #tpu.memory_space<vmem>>, vector<1x128xf32>
    %20 = vector.broadcast %19 : vector<1x128xf32> to vector<8x128xf32>
    %21 = arith.addf %18, %20 : vector<8x128xf32>
    %22 = math.tanh %21 : vector<8x128xf32>
    %c0_17 = arith.constant 0 : index
    %c0_18 = arith.constant 0 : index
    %23 = vector.load %arg8[%c0_17, %c0_18] : memref<8x128xf32, #tpu.memory_space<vmem>>, vector<8x128xf32>
    tpu.vector_store %arg8[%c0_17, %c0_18], %22 {strides = array<i32>} : memref<8x128xf32, #tpu.memory_space<vmem>>, vector<8x128xf32>,
    return
  }
  func.func @transform_0(%arg0: i32) -> (i32, i32) {
    %c0_i32 = arith.constant 0 : i32
    %c0_i32_0 = arith.constant 0 : i32
    return %arg0, %c0_i32 : i32, i32
  }
  func.func @transform_1(%arg0: i32) -> (i32, i32) {
    %c0_i32 = arith.constant 0 : i32
    %c0_i32_0 = arith.constant 0 : i32
    %c0_i32_1 = arith.constant 0 : i32
    return %c0_i32, %c0_i32_0 : i32, i32
  }
  func.func @transform_2(%arg0: i32) -> (i32, i32) {
    %c0_i32 = arith.constant 0 : i32
    %c0_i32_0 = arith.constant 0 : i32
    %c0_i32_1 = arith.constant 0 : i32
    return %c0_i32, %c0_i32_0 : i32, i32
  }
  func.func @transform_3(%arg0: i32) -> (i32, i32) {
    %c0_i32 = arith.constant 0 : i32
    %c0_i32_0 = arith.constant 0 : i32
    %c0_i32_1 = arith.constant 0 : i32
    return %c0_i32, %c0_i32_0 : i32, i32
  }
  func.func @transform_4(%arg0: i32) -> (i32, i32) {
    %c0_i32 = arith.constant 0 : i32
    %c0_i32_0 = arith.constant 0 : i32
    %c0_i32_1 = arith.constant 0 : i32
    return %c0_i32, %c0_i32_0 : i32, i32
  }
  func.func @transform_5(%arg0: i32) -> (i32, i32) {
    %c0_i32 = arith.constant 0 : i32
    %c0_i32_0 = arith.constant 0 : i32
    %c0_i32_1 = arith.constant 0 : i32
    return %c0_i32, %c0_i32_0 : i32, i32
  }
  func.func @transform_6(%arg0: i32) -> (i32, i32) {
    %c0_i32 = arith.constant 0 : i32
    %c0_i32_0 = arith.constant 0 : i32
    %c0_i32_1 = arith.constant 0 : i32
    return %c0_i32, %c0_i32_0 : i32, i32
  }
  func.func @transform_7(%arg0: i32) -> (i32, i32) {
    %c0_i32 = arith.constant 0 : i32
    %c0_i32_0 = arith.constant 0 : i32
    return %arg0, %c0_i32 : i32, i32
  }
}

</mosaic_0001>

<llo_original>
// kernel: tpu_custom_call.1
$region0: #{tpu_custom_call.1}
  #allocation0 [shape = 'u32[]', space=smem, size = 0x4, offset = 0x4, fixed_abs, tag = 'smem constant byte address 0x4 - core index']
  #allocation1 [shape = 'u32[144,128]{1,0:T(1,128)}', space=vmem, size = 0x12000, scoped, tag = 'internal scratch']
  %s0 = inlined_call_operand.hbm [shape: bf16[8,128], index: 0, kind: input, shape index: {}]
  %s1 = inlined_call_operand.hbm [shape: bf16[128,512], index: 1, kind: input, shape index: {}]
  %s2 = inlined_call_operand.hbm [shape: f32[1,512], index: 2, kind: input, shape index: {}]
  %s3 = inlined_call_operand.hbm [shape: bf16[512,384], index: 3, kind: input, shape index: {}]
  %s4 = inlined_call_operand.vmem [shape: f32[1,384], index: 4, kind: input, shape index: {}]
  %s5 = inlined_call_operand.hbm [shape: bf16[384,128], index: 5, kind: input, shape index: {}]
  %s6 = inlined_call_operand.vmem [shape: f32[1,128], index: 6, kind: input, shape index: {}]
  %s7 = inlined_call_operand.hbm [shape: f32[8,128], index: 7, kind: output, shape index: {}]
  %s8 = sld [smem:[#allocation0]]
  $region58: #{tpu_custom_call.1} parent=0
    _
  %s10 = ssub.s32 1, %s8
  %s11 = scalar_select 0, %s10, %s8
  $region1: #{tpu_custom_call.1} parent=0
    #allocation2 [shape = 'u8[2048]{0}', space=vmem, size = 0x800, scoped, tag = 'input window, operand 0, single buffered']
    #allocation3 [shape = 's32[1]{0}', space=sflag, size = 0x4, scoped, tag = 'scoped memory for tpu_custom_call.1']
    #allocation4 [shape = 's32[1]{0}', space=sflag, size = 0x4, scoped, tag = 'scoped memory for tpu_custom_call.1']
    #allocation5 [shape = 'u8[131072]{0}', space=vmem, size = 0x20000, scoped, tag = 'input window, operand 1, single buffered']
    #allocation6 [shape = 's32[1]{0}', space=sflag, size = 0x4, scoped, tag = 'scoped memory for tpu_custom_call.1']
    #allocation7 [shape = 'u8[2048]{0}', space=vmem, size = 0x800, scoped, tag = 'input window, operand 2, single buffered']
    #allocation8 [shape = 'u8[393216]{0}', space=vmem, size = 0x60000, scoped, tag = 'input window, operand 3, single buffered']
    #allocation9 [shape = 's32[1]{0}', space=sflag, size = 0x4, scoped, tag = 'scoped memory for tpu_custom_call.1']
    #allocation10 [shape = 'u8[98304]{0}', space=vmem, size = 0x18000, scoped, tag = 'input window, operand 5, single buffered']
    #allocation11 [shape = 'u8[4096]{0}', space=vmem, size = 0x1000, scoped, tag = 'output window, operand 0, single buffered']
    %12 = vsyncpa [#allocation3], 0
    %13 = vsyncpa [#allocation6], 0
    %14 = vsyncpa [#allocation9], 0
    %15 = vsyncpa [#allocation4], 0
    // Predicated region
    $region2: #{tpu_custom_call.1} parent=1 // pred_check
      _
    $region3: #{tpu_custom_call.1} parent=1 // pred_check_branch
      %17 = sbr.rel (0) target = $region5
    $region4: #{tpu_custom_call.1} parent=1 // pred_region
      %s19 = ssub.s32 64, 64
      %20 = vsyncadd [#allocation3], %s19
      %s22 = sshll.u32 [#allocation2], 4
      %s23 = int_to_ptr.vmem [resolvable:$true] %s22
      %25 = dma.hbm_to_vmem [thread:$0]  %s0, 64, %s23, [#allocation3]
    $region5: #{tpu_custom_call.1} parent=1 // pred_fallthru
      _
    // Predicated region
    $region6: #{tpu_custom_call.1} parent=1 // pred_check
      _
    $region7: #{tpu_custom_call.1} parent=1 // pred_check_branch
      %27 = sbr.rel (0) target = $region9
    $region8: #{tpu_custom_call.1} parent=1 // pred_region
      %s29 = ssub.s32 4096, 4096
      %30 = vsyncadd [#allocation6], %s29
      %s31 = sshll.u32 [#allocation5], 4
      %s32 = int_to_ptr.vmem [resolvable:$true] %s31
      %37 = dma.hbm_to_vmem [thread:$0]  %s1, 4096, %s32, [#allocation6], 256, 256, 16
    $region9: #{tpu_custom_call.1} parent=1 // pred_fallthru
      _
    // Predicated region
    $region10: #{tpu_custom_call.1} parent=1 // pred_check
      _
    $region11: #{tpu_custom_call.1} parent=1 // pred_check_branch
      %39 = sbr.rel (0) target = $region13
    $region12: #{tpu_custom_call.1} parent=1 // pred_region
      %s41 = ssub.s32 64, 64
      %42 = vsyncadd [#allocation6], %s41
      %s44 = sshll.u32 [#allocation7], 4
      %s45 = int_to_ptr.vmem [resolvable:$true] %s44
      %47 = dma.hbm_to_vmem [thread:$0]  %s2, 64, %s45, [#allocation6]
    $region13: #{tpu_custom_call.1} parent=1 // pred_fallthru
      _
    // Predicated region
    $region14: #{tpu_custom_call.1} parent=1 // pred_check
      _
    $region15: #{tpu_custom_call.1} parent=1 // pred_check_branch
      %49 = sbr.rel (0) target = $region17
    $region16: #{tpu_custom_call.1} parent=1 // pred_region
      %s51 = ssub.s32 12288, 12288
      %52 = vsyncadd [#allocation9], %s51
      %s53 = sshll.u32 [#allocation8], 4
      %s54 = int_to_ptr.vmem [resolvable:$true] %s53
      %59 = dma.hbm_to_vmem [thread:$0]  %s3, 12288, %s54, [#allocation9], 192, 192, 12
    $region17: #{tpu_custom_call.1} parent=1 // pred_fallthru
      _
    // Predicated region
    $region18: #{tpu_custom_call.1} parent=1 // pred_check
      _
    $region19: #{tpu_custom_call.1} parent=1 // pred_check_branch
      %61 = sbr.rel (0) target = $region21
    $region20: #{tpu_custom_call.1} parent=1 // pred_region
      _
    $region21: #{tpu_custom_call.1} parent=1 // pred_fallthru
      _
    // Predicated region
    $region22: #{tpu_custom_call.1} parent=1 // pred_check
      _
    $region23: #{tpu_custom_call.1} parent=1 // pred_check_branch
      %63 = sbr.rel (0) target = $region25
    $region24: #{tpu_custom_call.1} parent=1 // pred_region
      %s65 = ssub.s32 3072, 3072
      %66 = vsyncadd [#allocation9], %s65
      %s67 = sshll.u32 [#allocation10], 4
      %s68 = int_to_ptr.vmem [resolvable:$true] %s67
      %73 = dma.hbm_to_vmem [thread:$0]  %s5, 3072, %s68, [#allocation9], 64, 64, 4
    $region25: #{tpu_custom_call.1} parent=1 // pred_fallthru
      _
    // Predicated region
    $region26: #{tpu_custom_call.1} parent=1 // pred_check
      _
    $region27: #{tpu_custom_call.1} parent=1 // pred_check_branch
      %75 = sbr.rel (0) target = $region29
    $region28: #{tpu_custom_call.1} parent=1 // pred_region
      _
    $region29: #{tpu_custom_call.1} parent=1 // pred_fallthru
      _
    // Predicated region
    $region30: #{tpu_custom_call.1} parent=1 // pred_check
      _
    $region31: #{tpu_custom_call.1} parent=1 // pred_check_branch
      %77 = sbr.rel (0) target = $region33
    $region32: #{tpu_custom_call.1} parent=1 // pred_region
      %78 = dma.done [#allocation3], 64
    $region33: #{tpu_custom_call.1} parent=1 // pred_fallthru
      _
    // Predicated region
    $region34: #{tpu_custom_call.1} parent=1 // pred_check
      _
    $region35: #{tpu_custom_call.1} parent=1 // pred_check_branch
      %80 = sbr.rel (0) target = $region37
    $region36: #{tpu_custom_call.1} parent=1 // pred_region
      %81 = dma.done [#allocation6], 4096
    $region37: #{tpu_custom_call.1} parent=1 // pred_fallthru
      _
    // Predicated region
    $region38: #{tpu_custom_call.1} parent=1 // pred_check
      _
    $region39: #{tpu_custom_call.1} parent=1 // pred_check_branch
      %83 = sbr.rel (0) target = $region41
    $region40: #{tpu_custom_call.1} parent=1 // pred_region
      %84 = dma.done [#allocation6], 64
    $region41: #{tpu_custom_call.1} parent=1 // pred_fallthru
      _
    // Predicated region
    $region42: #{tpu_custom_call.1} parent=1 // pred_check
      _
    $region43: #{tpu_custom_call.1} parent=1 // pred_check_branch
      %86 = sbr.rel (0) target = $region45
    $region44: #{tpu_custom_call.1} parent=1 // pred_region
      %87 = dma.done [#allocation9], 12288
    $region45: #{tpu_custom_call.1} parent=1 // pred_fallthru
      _
    // Predicated region
    $region46: #{tpu_custom_call.1} parent=1 // pred_check
      _
    $region47: #{tpu_custom_call.1} parent=1 // pred_check_branch
      %89 = sbr.rel (0) target = $region49
    $region48: #{tpu_custom_call.1} parent=1 // pred_region
      %90 = dma.done [#allocation9], 3072
    $region49: #{tpu_custom_call.1} parent=1 // pred_fallthru
      _
    %v92 = vld [vmem:[#allocation2] sm:$0xf]
    %v93 = vld [vmem:[#allocation5] sm:$0xff]
    %v94 = vld [vmem:[#allocation5 + $0x8] sm:$0xff]
    %v95 = vld [vmem:[#allocation5 + $0x10] sm:$0xff]
    %v96 = vld [vmem:[#allocation5 + $0x18] sm:$0xff]
    %v97 = vld [vmem:[#allocation5 + $0x20] sm:$0xff]
    %v98 = vld [vmem:[#allocation5 + $0x28] sm:$0xff]
    %v99 = vld [vmem:[#allocation5 + $0x30] sm:$0xff]
    %v100 = vld [vmem:[#allocation5 + $0x38] sm:$0xff]
    %v101 = vld [vmem:[#allocation5 + $0x40] sm:$0xff]
    %v102 = vld [vmem:[#allocation5 + $0x48] sm:$0xff]
    %v103 = vld [vmem:[#allocation5 + $0x50] sm:$0xff]
    %v104 = vld [vmem:[#allocation5 + $0x58] sm:$0xff]
    %v105 = vld [vmem:[#allocation5 + $0x60] sm:$0xff]
    %v106 = vld [vmem:[#allocation5 + $0x68] sm:$0xff]
    %v107 = vld [vmem:[#allocation5 + $0x70] sm:$0xff]
    %v108 = vld [vmem:[#allocation5 + $0x78] sm:$0xff]
    %v109 = vld [vmem:[#allocation5 + $0x80] sm:$0xff]
    %v110 = vld [vmem:[#allocation5 + $0x88] sm:$0xff]
    %v111 = vld [vmem:[#allocation5 + $0x90] sm:$0xff]
    %v112 = vld [vmem:[#allocation5 + $0x98] sm:$0xff]
    %v113 = vld [vmem:[#allocation5 + $0xa0] sm:$0xff]
    %v114 = vld [vmem:[#allocation5 + $0xa8] sm:$0xff]
    %v115 = vld [vmem:[#allocation5 + $0xb0] sm:$0xff]
    %v116 = vld [vmem:[#allocation5 + $0xb8] sm:$0xff]
    %v117 = vld [vmem:[#allocation5 + $0xc0] sm:$0xff]
    %v118 = vld [vmem:[#allocation5 + $0xc8] sm:$0xff]
    %v119 = vld [vmem:[#allocation5 + $0xd0] sm:$0xff]
    %v120 = vld [vmem:[#allocation5 + $0xd8] sm:$0xff]
    %v121 = vld [vmem:[#allocation5 + $0xe0] sm:$0xff]
    %v122 = vld [vmem:[#allocation5 + $0xe8] sm:$0xff]
    %v123 = vld [vmem:[#allocation5 + $0xf0] sm:$0xff]
    %v124 = vld [vmem:[#allocation5 + $0xf8] sm:$0xff]
    %v125 = vld [vmem:[#allocation7] sm:$0xf]
    %v127 = vlaneseq
    %v128 = vshrl.u32 %v127, 7
    %v129 = vsub.s32 0, %v128
    %v130 = vrot.slane %v125, %v129
    %v131 = vlaneseq
    %v132 = vshrl.u32 %v131, 7
    %v133 = vsub.s32 1, %v132
    %v134 = vrot.slane %v125, %v133
    %v135 = vlaneseq
    %v136 = vshrl.u32 %v135, 7
    %v137 = vsub.s32 2, %v136
    %v138 = vrot.slane %v125, %v137
    %v139 = vlaneseq
    %v140 = vshrl.u32 %v139, 7
    %v141 = vsub.s32 3, %v140
    %v142 = vrot.slane %v125, %v141
    %v179 = vunpack.c.l.b16 %v93
    %v180 = vunpack.c.h.b16 %v93
    %v181 = vunpack.c.l.b16 %v94
    %v182 = vunpack.c.h.b16 %v94
    %v183 = vunpack.c.l.b16 %v95
    %v184 = vunpack.c.h.b16 %v95
    %v185 = vunpack.c.l.b16 %v96
    %v186 = vunpack.c.h.b16 %v96
    %v187 = vunpack.c.l.b16 %v97
    %v188 = vunpack.c.h.b16 %v97
    %v189 = vunpack.c.l.b16 %v98
    %v190 = vunpack.c.h.b16 %v98
    %v191 = vunpack.c.l.b16 %v99
    %v192 = vunpack.c.h.b16 %v99
    %v193 = vunpack.c.l.b16 %v100
    %v194 = vunpack.c.h.b16 %v100
    %v195 = vunpack.c.l.b16 %v101
    %v196 = vunpack.c.h.b16 %v101
    %v197 = vunpack.c.l.b16 %v102
    %v198 = vunpack.c.h.b16 %v102
    %v199 = vunpack.c.l.b16 %v103
    %v200 = vunpack.c.h.b16 %v103
    %v201 = vunpack.c.l.b16 %v104
    %v202 = vunpack.c.h.b16 %v104
    %v203 = vunpack.c.l.b16 %v105
    %v204 = vunpack.c.h.b16 %v105
    %v205 = vunpack.c.l.b16 %v106
    %v206 = vunpack.c.h.b16 %v106
    %v207 = vunpack.c.l.b16 %v107
    %v208 = vunpack.c.h.b16 %v107
    %v209 = vunpack.c.l.b16 %v108
    %v210 = vunpack.c.h.b16 %v108
    %v211 = vunpack.c.l.b16 %v109
    %v212 = vunpack.c.h.b16 %v109
    %v213 = vunpack.c.l.b16 %v110
    %v214 = vunpack.c.h.b16 %v110
    %v215 = vunpack.c.l.b16 %v111
    %v216 = vunpack.c.h.b16 %v111
    %v217 = vunpack.c.l.b16 %v112
    %v218 = vunpack.c.h.b16 %v112
    %v219 = vunpack.c.l.b16 %v113
    %v220 = vunpack.c.h.b16 %v113
    %v221 = vunpack.c.l.b16 %v114
    %v222 = vunpack.c.h.b16 %v114
    %v223 = vunpack.c.l.b16 %v115
    %v224 = vunpack.c.h.b16 %v115
    %v225 = vunpack.c.l.b16 %v116
    %v226 = vunpack.c.h.b16 %v116
    %v227 = vunpack.c.l.b16 %v117
    %v228 = vunpack.c.h.b16 %v117
    %v229 = vunpack.c.l.b16 %v118
    %v230 = vunpack.c.h.b16 %v118
    %v231 = vunpack.c.l.b16 %v119
    %v232 = vunpack.c.h.b16 %v119
    %v233 = vunpack.c.l.b16 %v120
    %v234 = vunpack.c.h.b16 %v120
    %v235 = vunpack.c.l.b16 %v121
    %v236 = vunpack.c.h.b16 %v121
    %v237 = vunpack.c.l.b16 %v122
    %v238 = vunpack.c.h.b16 %v122
    %v239 = vunpack.c.l.b16 %v123
    %v240 = vunpack.c.h.b16 %v123
    %v241 = vunpack.c.l.b16 %v124
    %v242 = vunpack.c.h.b16 %v124
    %v243 = vpack.c.b16 %v183, %v179
    %v244 = vpack.c.b16 %v184, %v180
    %v245 = vpack.c.b16 %v185, %v181
    %v246 = vpack.c.b16 %v186, %v182
    %v247 = vpack.c.b16 %v191, %v187
    %v248 = vpack.c.b16 %v192, %v188
    %v249 = vpack.c.b16 %v193, %v189
    %v250 = vpack.c.b16 %v194, %v190
    %v251 = vpack.c.b16 %v199, %v195
    %v252 = vpack.c.b16 %v200, %v196
    %v253 = vpack.c.b16 %v201, %v197
    %v254 = vpack.c.b16 %v202, %v198
    %v255 = vpack.c.b16 %v207, %v203
    %v256 = vpack.c.b16 %v208, %v204
    %v257 = vpack.c.b16 %v209, %v205
    %v258 = vpack.c.b16 %v210, %v206
    %v259 = vpack.c.b16 %v215, %v211
    %v260 = vpack.c.b16 %v216, %v212
    %v261 = vpack.c.b16 %v217, %v213
    %v262 = vpack.c.b16 %v218, %v214
    %v263 = vpack.c.b16 %v223, %v219
    %v264 = vpack.c.b16 %v224, %v220
    %v265 = vpack.c.b16 %v225, %v221
    %v266 = vpack.c.b16 %v226, %v222
    %v267 = vpack.c.b16 %v231, %v227
    %v268 = vpack.c.b16 %v232, %v228
    %v269 = vpack.c.b16 %v233, %v229
    %v270 = vpack.c.b16 %v234, %v230
    %v271 = vpack.c.b16 %v239, %v235
    %v272 = vpack.c.b16 %v240, %v236
    %v273 = vpack.c.b16 %v241, %v237
    %v274 = vpack.c.b16 %v242, %v238
    %307 = vmatprep.subr.bf16.mxu0 %v272
    %308 = vmatpush1.bf16.msra.mxu0 %v271
    %309 = vmatprep.subr.bf16.mxu0 %v268
    %310 = vmatpush1.bf16.msra.mxu0 %v267
    %311 = vmatprep.subr.bf16.mxu0 %v264
    %312 = vmatpush1.bf16.msra.mxu0 %v263
    %313 = vmatprep.subr.bf16.mxu0 %v260
    %314 = vmatpush1.bf16.msra.mxu0 %v259
    %315 = vmatprep.subr.bf16.mxu0 %v256
    %316 = vmatpush1.bf16.msra.mxu0 %v255
    %317 = vmatprep.subr.bf16.mxu0 %v252
    %318 = vmatpush1.bf16.msra.mxu0 %v251
    %319 = vmatprep.subr.bf16.mxu0 %v248
    %320 = vmatpush1.bf16.msra.mxu0 %v247
    %321 = vmatprep.subr.bf16.mxu0 %v244
    %322 = vmatpush1.bf16.msra.mxu0 %v243
    %323 = vmatprep.subr.bf16.mxu0 0
    %324 = vmatpush2.bf16.msra.mxu0 0
    %325 = vmatprep.subr.bf16.mxu0 0
    %326 = vmatpush2.bf16.msra.mxu0 0
    %327 = vmatprep.subr.bf16.mxu0 0
    %328 = vmatpush2.bf16.msra.mxu0 0
    %329 = vmatprep.subr.bf16.mxu0 0
    %330 = vmatpush2.bf16.msra.mxu0 0
    %331 = vmatprep.subr.bf16.mxu0 0
    %332 = vmatpush2.bf16.msra.mxu0 0
    %333 = vmatprep.subr.bf16.mxu0 0
    %334 = vmatpush2.bf16.msra.mxu0 0
    %335 = vmatprep.subr.bf16.mxu0 0
    %336 = vmatpush2.bf16.msra.mxu0 0
    %337 = vmatprep.subr.bf16.mxu0 0
    %338 = vmatpush2.bf16.msra.mxu0 0
    %339 = vmatprep.mubr.bf16.mxu0 0
    %340 = vmatmul.mubr.bf16.gmra.mxu0 %v92
    %v341 = vpop.f32.mrf.mxu0
    %v342 = vadd.f32 %v130, %v341
    %v343 = vpop.f32.mrf.mxu0
    %v344 = vadd.f32 %v134, %v343
    %v345 = vpop.f32.mrf.mxu0
    %v346 = vpop.f32.mrf.mxu0
    %347 = vdwg.mxu0
    %348 = vmatprep.subr.bf16.mxu0 %v274
    %349 = vmatpush1.bf16.msra.mxu0 %v273
    %350 = vmatprep.subr.bf16.mxu0 %v270
    %351 = vmatpush1.bf16.msra.mxu0 %v269
    %352 = vmatprep.subr.bf16.mxu0 %v266
    %353 = vmatpush1.bf16.msra.mxu0 %v265
    %354 = vmatprep.subr.bf16.mxu0 %v262
    %355 = vmatpush1.bf16.msra.mxu0 %v261
    %356 = vmatprep.subr.bf16.mxu0 %v258
    %357 = vmatpush1.bf16.msra.mxu0 %v257
    %358 = vmatprep.subr.bf16.mxu0 %v254
    %359 = vmatpush1.bf16.msra.mxu0 %v253
    %360 = vmatprep.subr.bf16.mxu0 %v250
    %361 = vmatpush1.bf16.msra.mxu0 %v249
    %362 = vmatprep.subr.bf16.mxu0 %v246
    %363 = vmatpush1.bf16.msra.mxu0 %v245
    %364 = vmatprep.subr.bf16.mxu0 0
    %365 = vmatpush2.bf16.msra.mxu0 0
    %366 = vmatprep.subr.bf16.mxu0 0
    %367 = vmatpush2.bf16.msra.mxu0 0
    %368 = vmatprep.subr.bf16.mxu0 0
    %369 = vmatpush2.bf16.msra.mxu0 0
    %370 = vmatprep.subr.bf16.mxu0 0
    %371 = vmatpush2.bf16.msra.mxu0 0
    %372 = vmatprep.subr.bf16.mxu0 0
    %373 = vmatpush2.bf16.msra.mxu0 0
    %374 = vmatprep.subr.bf16.mxu0 0
    %375 = vmatpush2.bf16.msra.mxu0 0
    %376 = vmatprep.subr.bf16.mxu0 0
    %377 = vmatpush2.bf16.msra.mxu0 0
    %378 = vmatprep.subr.bf16.mxu0 0
    %379 = vmatpush2.bf16.msra.mxu0 0
    %380 = vmatprep.mubr.bf16.mxu0 0
    %381 = vmatmul.mubr.bf16.gmra.mxu0 %v92
    %v382 = vpop.f32.mrf.mxu0
    %v383 = vadd.f32 %v138, %v382
    %v384 = vpop.f32.mrf.mxu0
    %v385 = vadd.f32 %v142, %v384
    %v386 = vpop.f32.mrf.mxu0
    %v387 = vpop.f32.mrf.mxu0
    %388 = vdwg.mxu0
    %v389 = vmax.f32 %v342, 0.0
    %v390 = vmax.f32 %v344, 0.0
    %v391 = vmax.f32 %v383, 0.0
    %v392 = vmax.f32 %v385, 0.0
    %v393 = vpack.c.bf16 %v389, %v389
    %v394 = vpack.c.bf16 %v390, %v390
    %v395 = vpack.c.bf16 %v391, %v391
    %v396 = vpack.c.bf16 %v392, %v392
    %v397 = vld [vmem:[#allocation8] sm:$0xff]
    %v398 = vld [vmem:[#allocation8 + $0x8] sm:$0xf]
    %v399 = vld [vmem:[#allocation8 + $0xc] sm:$0xff]
    %v400 = vld [vmem:[#allocation8 + $0x14] sm:$0xf]
    %v401 = vld [vmem:[#allocation8 + $0x18] sm:$0xff]
    %v402 = vld [vmem:[#allocation8 + $0x20] sm:$0xf]
    %v403 = vld [vmem:[#allocation8 + $0x24] sm:$0xff]
    %v404 = vld [vmem:[#allocation8 + $0x2c] sm:$0xf]
    %v405 = vld [vmem:[#allocation8 + $0x30] sm:$0xff]
    %v406 = vld [vmem:[#allocation8 + $0x38] sm:$0xf]
    %v407 = vld [vmem:[#allocation8 + $0x3c] sm:$0xff]
    %v408 = vld [vmem:[#allocation8 + $0x44] sm:$0xf]
    %v409 = vld [vmem:[#allocation8 + $0x48] sm:$0xff]
    %v410 = vld [vmem:[#allocation8 + $0x50] sm:$0xf]
    %v411 = vld [vmem:[#allocation8 + $0x54] sm:$0xff]
    %v412 = vld [vmem:[#allocation8 + $0x5c] sm:$0xf]
    %v413 = vld [vmem:[#allocation8 + $0x60] sm:$0xff]
    %v414 = vld [vmem:[#allocation8 + $0x68] sm:$0xf]
    %v415 = vld [vmem:[#allocation8 + $0x6c] sm:$0xff]
    %v416 = vld [vmem:[#allocation8 + $0x74] sm:$0xf]
    %v417 = vld [vmem:[#allocation8 + $0x78] sm:$0xff]
    %v418 = vld [vmem:[#allocation8 + $0x80] sm:$0xf]
    %v419 = vld [vmem:[#allocation8 + $0x84] sm:$0xff]
    %v420 = vld [vmem:[#allocation8 + $0x8c] sm:$0xf]
    %v421 = vld [vmem:[#allocation8 + $0x90] sm:$0xff]
    %v422 = vld [vmem:[#allocation8 + $0x98] sm:$0xf]
    %v423 = vld [vmem:[#allocation8 + $0x9c] sm:$0xff]
    %v424 = vld [vmem:[#allocation8 + $0xa4] sm:$0xf]
    %v425 = vld [vmem:[#allocation8 + $0xa8] sm:$0xff]
    %v426 = vld [vmem:[#allocation8 + $0xb0] sm:$0xf]
    %v427 = vld [vmem:[#allocation8 + $0xb4] sm:$0xff]
    %v428 = vld [vmem:[#allocation8 + $0xbc] sm:$0xf]
    %v429 = vld [vmem:[#allocation8 + $0xc0] sm:$0xff]
    %v430 = vld [vmem:[#allocation8 + $0xc8] sm:$0xf]
    %v431 = vld [vmem:[#allocation8 + $0xcc] sm:$0xff]
    %v432 = vld [vmem:[#allocation8 + $0xd4] sm:$0xf]
    %v433 = vld [vmem:[#allocation8 + $0xd8] sm:$0xff]
    %v434 = vld [vmem:[#allocation8 + $0xe0] sm:$0xf]
    %v435 = vld [vmem:[#allocation8 + $0xe4] sm:$0xff]
    %v436 = vld [vmem:[#allocation8 + $0xec] sm:$0xf]
    %v437 = vld [vmem:[#allocation8 + $0xf0] sm:$0xff]
    %v438 = vld [vmem:[#allocation8 + $0xf8] sm:$0xf]
    %v439 = vld [vmem:[#allocation8 + $0xfc] sm:$0xff]
    %v440 = vld [vmem:[#allocation8 + $0x104] sm:$0xf]
    %v441 = vld [vmem:[#allocation8 + $0x108] sm:$0xff]
    %v442 = vld [vmem:[#allocation8 + $0x110] sm:$0xf]
    %v443 = vld [vmem:[#allocation8 + $0x114] sm:$0xff]
    %v444 = vld [vmem:[#allocation8 + $0x11c] sm:$0xf]
    %v445 = vld [vmem:[#allocation8 + $0x120] sm:$0xff]
    %v446 = vld [vmem:[#allocation8 + $0x128] sm:$0xf]
    %v447 = vld [vmem:[#allocation8 + $0x12c] sm:$0xff]
    %v448 = vld [vmem:[#allocation8 + $0x134] sm:$0xf]
    %v449 = vld [vmem:[#allocation8 + $0x138] sm:$0xff]
    %v450 = vld [vmem:[#allocation8 + $0x140] sm:$0xf]
    %v451 = vld [vmem:[#allocation8 + $0x144] sm:$0xff]
    %v452 = vld [vmem:[#allocation8 + $0x14c] sm:$0xf]
    %v453 = vld [vmem:[#allocation8 + $0x150] sm:$0xff]
    %v454 = vld [vmem:[#allocation8 + $0x158] sm:$0xf]
    %v455 = vld [vmem:[#allocation8 + $0x15c] sm:$0xff]
    %v456 = vld [vmem:[#allocation8 + $0x164] sm:$0xf]
    %v457 = vld [vmem:[#allocation8 + $0x168] sm:$0xff]
    %v458 = vld [vmem:[#allocation8 + $0x170] sm:$0xf]
    %v459 = vld [vmem:[#allocation8 + $0x174] sm:$0xff]
    %v460 = vld [vmem:[#allocation8 + $0x17c] sm:$0xf]
    %v461 = vld [vmem:[#allocation8 + $0x180] sm:$0xff]
    %v462 = vld [vmem:[#allocation8 + $0x188] sm:$0xf]
    %v463 = vld [vmem:[#allocation8 + $0x18c] sm:$0xff]
    %v464 = vld [vmem:[#allocation8 + $0x194] sm:$0xf]
    %v465 = vld [vmem:[#allocation8 + $0x198] sm:$0xff]
    %v466 = vld [vmem:[#allocation8 + $0x1a0] sm:$0xf]
    %v467 = vld [vmem:[#allocation8 + $0x1a4] sm:$0xff]
    %v468 = vld [vmem:[#allocation8 + $0x1ac] sm:$0xf]
    %v469 = vld [vmem:[#allocation8 + $0x1b0] sm:$0xff]
    %v470 = vld [vmem:[#allocation8 + $0x1b8] sm:$0xf]
    %v471 = vld [vmem:[#allocation8 + $0x1bc] sm:$0xff]
    %v472 = vld [vmem:[#allocation8 + $0x1c4] sm:$0xf]
    %v473 = vld [vmem:[#allocation8 + $0x1c8] sm:$0xff]
    %v474 = vld [vmem:[#allocation8 + $0x1d0] sm:$0xf]
    %v475 = vld [vmem:[#allocation8 + $0x1d4] sm:$0xff]
    %v476 = vld [vmem:[#allocation8 + $0x1dc] sm:$0xf]
    %v477 = vld [vmem:[#allocation8 + $0x1e0] sm:$0xff]
    %v478 = vld [vmem:[#allocation8 + $0x1e8] sm:$0xf]
    %v479 = vld [vmem:[#allocation8 + $0x1ec] sm:$0xff]
    %v480 = vld [vmem:[#allocation8 + $0x1f4] sm:$0xf]
    %v481 = vld [vmem:[#allocation8 + $0x1f8] sm:$0xff]
    %v482 = vld [vmem:[#allocation8 + $0x200] sm:$0xf]
    %v483 = vld [vmem:[#allocation8 + $0x204] sm:$0xff]
    %v484 = vld [vmem:[#allocation8 + $0x20c] sm:$0xf]
    %v485 = vld [vmem:[#allocation8 + $0x210] sm:$0xff]
    %v486 = vld [vmem:[#allocation8 + $0x218] sm:$0xf]
    %v487 = vld [vmem:[#allocation8 + $0x21c] sm:$0xff]
    %v488 = vld [vmem:[#allocation8 + $0x224] sm:$0xf]
    %v489 = vld [vmem:[#allocation8 + $0x228] sm:$0xff]
    %v490 = vld [vmem:[#allocation8 + $0x230] sm:$0xf]
    %v491 = vld [vmem:[#allocation8 + $0x234] sm:$0xff]
    %v492 = vld [vmem:[#allocation8 + $0x23c] sm:$0xf]
    %v493 = vld [vmem:[#allocation8 + $0x240] sm:$0xff]
    %v494 = vld [vmem:[#allocation8 + $0x248] sm:$0xf]
    %v495 = vld [vmem:[#allocation8 + $0x24c] sm:$0xff]
    %v496 = vld [vmem:[#allocation8 + $0x254] sm:$0xf]
    %v497 = vld [vmem:[#allocation8 + $0x258] sm:$0xff]
    %v498 = vld [vmem:[#allocation8 + $0x260] sm:$0xf]
    %v499 = vld [vmem:[#allocation8 + $0x264] sm:$0xff]
    %v500 = vld [vmem:[#allocation8 + $0x26c] sm:$0xf]
    %v501 = vld [vmem:[#allocation8 + $0x270] sm:$0xff]
    %v502 = vld [vmem:[#allocation8 + $0x278] sm:$0xf]
    %v503 = vld [vmem:[#allocation8 + $0x27c] sm:$0xff]
    %v504 = vld [vmem:[#allocation8 + $0x284] sm:$0xf]
    %v505 = vld [vmem:[#allocation8 + $0x288] sm:$0xff]
    %v506 = vld [vmem:[#allocation8 + $0x290] sm:$0xf]
    %v507 = vld [vmem:[#allocation8 + $0x294] sm:$0xff]
    %v508 = vld [vmem:[#allocation8 + $0x29c] sm:$0xf]
    %v509 = vld [vmem:[#allocation8 + $0x2a0] sm:$0xff]
    %v510 = vld [vmem:[#allocation8 + $0x2a8] sm:$0xf]
    %v511 = vld [vmem:[#allocation8 + $0x2ac] sm:$0xff]
    %v512 = vld [vmem:[#allocation8 + $0x2b4] sm:$0xf]
    %v513 = vld [vmem:[#allocation8 + $0x2b8] sm:$0xff]
    %v514 = vld [vmem:[#allocation8 + $0x2c0] sm:$0xf]
    %v515 = vld [vmem:[#allocation8 + $0x2c4] sm:$0xff]
    %v516 = vld [vmem:[#allocation8 + $0x2cc] sm:$0xf]
    %v517 = vld [vmem:[#allocation8 + $0x2d0] sm:$0xff]
    %v518 = vld [vmem:[#allocation8 + $0x2d8] sm:$0xf]
    %v519 = vld [vmem:[#allocation8 + $0x2dc] sm:$0xff]
    %v520 = vld [vmem:[#allocation8 + $0x2e4] sm:$0xf]
    %v521 = vld [vmem:[#allocation8 + $0x2e8] sm:$0xff]
    %v522 = vld [vmem:[#allocation8 + $0x2f0] sm:$0xf]
    %v523 = vld [vmem:[#allocation8 + $0x2f4] sm:$0xff]
    %v524 = vld [vmem:[#allocation8 + $0x2fc] sm:$0xf]
    %v525 = vld [vmem:[%s4] sm:$0x7]
    %v527 = vlaneseq
    %v528 = vshrl.u32 %v527, 7
    %v529 = vsub.s32 0, %v528
    %v530 = vrot.slane %v525, %v529
    %v531 = vlaneseq
    %v532 = vshrl.u32 %v531, 7
    %v533 = vsub.s32 1, %v532
    %v534 = vrot.slane %v525, %v533
    %v535 = vlaneseq
    %v536 = vshrl.u32 %v535, 7
    %v537 = vsub.s32 2, %v536
    %v538 = vrot.slane %v525, %v537
    %v670 = vunpack.c.l.b16 %v397
    %v671 = vunpack.c.h.b16 %v397
    %v672 = vunpack.c.l.b16 %v398
    %v673 = vunpack.c.l.b16 %v399
    %v674 = vunpack.c.h.b16 %v399
    %v675 = vunpack.c.l.b16 %v400
    %v676 = vunpack.c.l.b16 %v401
    %v677 = vunpack.c.h.b16 %v401
    %v678 = vunpack.c.l.b16 %v402
    %v679 = vunpack.c.l.b16 %v403
    %v680 = vunpack.c.h.b16 %v403
    %v681 = vunpack.c.l.b16 %v404
    %v682 = vunpack.c.l.b16 %v405
    %v683 = vunpack.c.h.b16 %v405
    %v684 = vunpack.c.l.b16 %v406
    %v685 = vunpack.c.l.b16 %v407
    %v686 = vunpack.c.h.b16 %v407
    %v687 = vunpack.c.l.b16 %v408
    %v688 = vunpack.c.l.b16 %v409
    %v689 = vunpack.c.h.b16 %v409
    %v690 = vunpack.c.l.b16 %v410
    %v691 = vunpack.c.l.b16 %v411
    %v692 = vunpack.c.h.b16 %v411
    %v693 = vunpack.c.l.b16 %v412
    %v694 = vunpack.c.l.b16 %v413
    %v695 = vunpack.c.h.b16 %v413
    %v696 = vunpack.c.l.b16 %v414
    %v697 = vunpack.c.l.b16 %v415
    %v698 = vunpack.c.h.b16 %v415
    %v699 = vunpack.c.l.b16 %v416
    %v700 = vunpack.c.l.b16 %v417
    %v701 = vunpack.c.h.b16 %v417
    %v702 = vunpack.c.l.b16 %v418
    %v703 = vunpack.c.l.b16 %v419
    %v704 = vunpack.c.h.b16 %v419
    %v705 = vunpack.c.l.b16 %v420
    %v706 = vunpack.c.l.b16 %v421
    %v707 = vunpack.c.h.b16 %v421
    %v708 = vunpack.c.l.b16 %v422
    %v709 = vunpack.c.l.b16 %v423
    %v710 = vunpack.c.h.b16 %v423
    %v711 = vunpack.c.l.b16 %v424
    %v712 = vunpack.c.l.b16 %v425
    %v713 = vunpack.c.h.b16 %v425
    %v714 = vunpack.c.l.b16 %v426
    %v715 = vunpack.c.l.b16 %v427
    %v716 = vunpack.c.h.b16 %v427
    %v717 = vunpack.c.l.b16 %v428
    %v718 = vunpack.c.l.b16 %v429
    %v719 = vunpack.c.h.b16 %v429
    %v720 = vunpack.c.l.b16 %v430
    %v721 = vunpack.c.l.b16 %v431
    %v722 = vunpack.c.h.b16 %v431
    %v723 = vunpack.c.l.b16 %v432
    %v724 = vunpack.c.l.b16 %v433
    %v725 = vunpack.c.h.b16 %v433
    %v726 = vunpack.c.l.b16 %v434
    %v727 = vunpack.c.l.b16 %v435
    %v728 = vunpack.c.h.b16 %v435
    %v729 = vunpack.c.l.b16 %v436
    %v730 = vunpack.c.l.b16 %v437
    %v731 = vunpack.c.h.b16 %v437
    %v732 = vunpack.c.l.b16 %v438
    %v733 = vunpack.c.l.b16 %v439
    %v734 = vunpack.c.h.b16 %v439
    %v735 = vunpack.c.l.b16 %v440
    %v736 = vunpack.c.l.b16 %v441
    %v737 = vunpack.c.h.b16 %v441
    %v738 = vunpack.c.l.b16 %v442
    %v739 = vunpack.c.l.b16 %v443
    %v740 = vunpack.c.h.b16 %v443
    %v741 = vunpack.c.l.b16 %v444
    %v742 = vunpack.c.l.b16 %v445
    %v743 = vunpack.c.h.b16 %v445
    %v744 = vunpack.c.l.b16 %v446
    %v745 = vunpack.c.l.b16 %v447
    %v746 = vunpack.c.h.b16 %v447
    %v747 = vunpack.c.l.b16 %v448
    %v748 = vunpack.c.l.b16 %v449
    %v749 = vunpack.c.h.b16 %v449
    %v750 = vunpack.c.l.b16 %v450
    %v751 = vunpack.c.l.b16 %v451
    %v752 = vunpack.c.h.b16 %v451
    %v753 = vunpack.c.l.b16 %v452
    %v754 = vunpack.c.l.b16 %v453
    %v755 = vunpack.c.h.b16 %v453
    %v756 = vunpack.c.l.b16 %v454
    %v757 = vunpack.c.l.b16 %v455
    %v758 = vunpack.c.h.b16 %v455
    %v759 = vunpack.c.l.b16 %v456
    %v760 = vunpack.c.l.b16 %v457
    %v761 = vunpack.c.h.b16 %v457
    %v762 = vunpack.c.l.b16 %v458
    %v763 = vunpack.c.l.b16 %v459
    %v764 = vunpack.c.h.b16 %v459
    %v765 = vunpack.c.l.b16 %v460
    %v766 = vunpack.c.l.b16 %v461
    %v767 = vunpack.c.h.b16 %v461
    %v768 = vunpack.c.l.b16 %v462
    %v769 = vunpack.c.l.b16 %v463
    %v770 = vunpack.c.h.b16 %v463
    %v771 = vunpack.c.l.b16 %v464
    %v772 = vunpack.c.l.b16 %v465
    %v773 = vunpack.c.h.b16 %v465
    %v774 = vunpack.c.l.b16 %v466
    %v775 = vunpack.c.l.b16 %v467
    %v776 = vunpack.c.h.b16 %v467
    %v777 = vunpack.c.l.b16 %v468
    %v778 = vunpack.c.l.b16 %v469
    %v779 = vunpack.c.h.b16 %v469
    %v780 = vunpack.c.l.b16 %v470
    %v781 = vunpack.c.l.b16 %v471
    %v782 = vunpack.c.h.b16 %v471
    %v783 = vunpack.c.l.b16 %v472
    %v784 = vunpack.c.l.b16 %v473
    %v785 = vunpack.c.h.b16 %v473
    %v786 = vunpack.c.l.b16 %v474
    %v787 = vunpack.c.l.b16 %v475
    %v788 = vunpack.c.h.b16 %v475
    %v789 = vunpack.c.l.b16 %v476
    %v790 = vunpack.c.l.b16 %v477
    %v791 = vunpack.c.h.b16 %v477
    %v792 = vunpack.c.l.b16 %v478
    %v793 = vunpack.c.l.b16 %v479
    %v794 = vunpack.c.h.b16 %v479
    %v795 = vunpack.c.l.b16 %v480
    %v796 = vunpack.c.l.b16 %v481
    %v797 = vunpack.c.h.b16 %v481
    %v798 = vunpack.c.l.b16 %v482
    %v799 = vunpack.c.l.b16 %v483
    %v800 = vunpack.c.h.b16 %v483
    %v801 = vunpack.c.l.b16 %v484
    %v802 = vunpack.c.l.b16 %v485
    %v803 = vunpack.c.h.b16 %v485
    %v804 = vunpack.c.l.b16 %v486
    %v805 = vunpack.c.l.b16 %v487
    %v806 = vunpack.c.h.b16 %v487
    %v807 = vunpack.c.l.b16 %v488
    %v808 = vunpack.c.l.b16 %v489
    %v809 = vunpack.c.h.b16 %v489
    %v810 = vunpack.c.l.b16 %v490
    %v811 = vunpack.c.l.b16 %v491
    %v812 = vunpack.c.h.b16 %v491
    %v813 = vunpack.c.l.b16 %v492
    %v814 = vunpack.c.l.b16 %v493
    %v815 = vunpack.c.h.b16 %v493
    %v816 = vunpack.c.l.b16 %v494
    %v817 = vunpack.c.l.b16 %v495
    %v818 = vunpack.c.h.b16 %v495
    %v819 = vunpack.c.l.b16 %v496
    %v820 = vunpack.c.l.b16 %v497
    %v821 = vunpack.c.h.b16 %v497
    %v822 = vunpack.c.l.b16 %v498
    %v823 = vunpack.c.l.b16 %v499
    %v824 = vunpack.c.h.b16 %v499
    %v825 = vunpack.c.l.b16 %v500
    %v826 = vunpack.c.l.b16 %v501
    %v827 = vunpack.c.h.b16 %v501
    %v828 = vunpack.c.l.b16 %v502
    %v829 = vunpack.c.l.b16 %v503
    %v830 = vunpack.c.h.b16 %v503
    %v831 = vunpack.c.l.b16 %v504
    %v832 = vunpack.c.l.b16 %v505
    %v833 = vunpack.c.h.b16 %v505
    %v834 = vunpack.c.l.b16 %v506
    %v835 = vunpack.c.l.b16 %v507
    %v836 = vunpack.c.h.b16 %v507
    %v837 = vunpack.c.l.b16 %v508
    %v838 = vunpack.c.l.b16 %v509
    %v839 = vunpack.c.h.b16 %v509
    %v840 = vunpack.c.l.b16 %v510
    %v841 = vunpack.c.l.b16 %v511
    %v842 = vunpack.c.h.b16 %v511
    %v843 = vunpack.c.l.b16 %v512
    %v844 = vunpack.c.l.b16 %v513
    %v845 = vunpack.c.h.b16 %v513
    %v846 = vunpack.c.l.b16 %v514
    %v847 = vunpack.c.l.b16 %v515
    %v848 = vunpack.c.h.b16 %v515
    %v849 = vunpack.c.l.b16 %v516
    %v850 = vunpack.c.l.b16 %v517
    %v851 = vunpack.c.h.b16 %v517
    %v852 = vunpack.c.l.b16 %v518
    %v853 = vunpack.c.l.b16 %v519
    %v854 = vunpack.c.h.b16 %v519
    %v855 = vunpack.c.l.b16 %v520
    %v856 = vunpack.c.l.b16 %v521
    %v857 = vunpack.c.h.b16 %v521
    %v858 = vunpack.c.l.b16 %v522
    %v859 = vunpack.c.l.b16 %v523
    %v860 = vunpack.c.h.b16 %v523
    %v861 = vunpack.c.l.b16 %v524
    %v862 = vpack.c.b16 %v673, %v670
    %v863 = vpack.c.b16 %v674, %v671
    %v864 = vpack.c.b16 %v675, %v672
    %v865 = vpack.c.b16 %v679, %v676
    %v866 = vpack.c.b16 %v680, %v677
    %v867 = vpack.c.b16 %v681, %v678
    %v868 = vpack.c.b16 %v685, %v682
    %v869 = vpack.c.b16 %v686, %v683
    %v870 = vpack.c.b16 %v687, %v684
    %v871 = vpack.c.b16 %v691, %v688
    %v872 = vpack.c.b16 %v692, %v689
    %v873 = vpack.c.b16 %v693, %v690
    %v874 = vpack.c.b16 %v697, %v694
    %v875 = vpack.c.b16 %v698, %v695
    %v876 = vpack.c.b16 %v699, %v696
    %v877 = vpack.c.b16 %v703, %v700
    %v878 = vpack.c.b16 %v704, %v701
    %v879 = vpack.c.b16 %v705, %v702
    %v880 = vpack.c.b16 %v709, %v706
    %v881 = vpack.c.b16 %v710, %v707
    %v882 = vpack.c.b16 %v711, %v708
    %v883 = vpack.c.b16 %v715, %v712
    %v884 = vpack.c.b16 %v716, %v713
    %v885 = vpack.c.b16 %v717, %v714
    %v886 = vpack.c.b16 %v721, %v718
    %v887 = vpack.c.b16 %v722, %v719
    %v888 = vpack.c.b16 %v723, %v720
    %v889 = vpack.c.b16 %v727, %v724
    %v890 = vpack.c.b16 %v728, %v725
    %v891 = vpack.c.b16 %v729, %v726
    %v892 = vpack.c.b16 %v733, %v730
    %v893 = vpack.c.b16 %v734, %v731
    %v894 = vpack.c.b16 %v735, %v732
    %v895 = vpack.c.b16 %v739, %v736
    %v896 = vpack.c.b16 %v740, %v737
    %v897 = vpack.c.b16 %v741, %v738
    %v898 = vpack.c.b16 %v745, %v742
    %v899 = vpack.c.b16 %v746, %v743
    %v900 = vpack.c.b16 %v747, %v744
    %v901 = vpack.c.b16 %v751, %v748
    %v902 = vpack.c.b16 %v752, %v749
    %v903 = vpack.c.b16 %v753, %v750
    %v904 = vpack.c.b16 %v757, %v754
    %v905 = vpack.c.b16 %v758, %v755
    %v906 = vpack.c.b16 %v759, %v756
    %v907 = vpack.c.b16 %v763, %v760
    %v908 = vpack.c.b16 %v764, %v761
    %v909 = vpack.c.b16 %v765, %v762
    %v910 = vpack.c.b16 %v769, %v766
    %v911 = vpack.c.b16 %v770, %v767
    %v912 = vpack.c.b16 %v771, %v768
    %v913 = vpack.c.b16 %v775, %v772
    %v914 = vpack.c.b16 %v776, %v773
    %v915 = vpack.c.b16 %v777, %v774
    %v916 = vpack.c.b16 %v781, %v778
    %v917 = vpack.c.b16 %v782, %v779
    %v918 = vpack.c.b16 %v783, %v780
    %v919 = vpack.c.b16 %v787, %v784
    %v920 = vpack.c.b16 %v788, %v785
    %v921 = vpack.c.b16 %v789, %v786
    %v922 = vpack.c.b16 %v793, %v790
    %v923 = vpack.c.b16 %v794, %v791
    %v924 = vpack.c.b16 %v795, %v792
    %v925 = vpack.c.b16 %v799, %v796
    %v926 = vpack.c.b16 %v800, %v797
    %v927 = vpack.c.b16 %v801, %v798
    %v928 = vpack.c.b16 %v805, %v802
    %v929 = vpack.c.b16 %v806, %v803
    %v930 = vpack.c.b16 %v807, %v804
    %v931 = vpack.c.b16 %v811, %v808
    %v932 = vpack.c.b16 %v812, %v809
    %v933 = vpack.c.b16 %v813, %v810
    %v934 = vpack.c.b16 %v817, %v814
    %v935 = vpack.c.b16 %v818, %v815
    %v936 = vpack.c.b16 %v819, %v816
    %v937 = vpack.c.b16 %v823, %v820
    %v938 = vpack.c.b16 %v824, %v821
    %v939 = vpack.c.b16 %v825, %v822
    %v940 = vpack.c.b16 %v829, %v826
    %v941 = vpack.c.b16 %v830, %v827
    %v942 = vpack.c.b16 %v831, %v828
    %v943 = vpack.c.b16 %v835, %v832
    %v944 = vpack.c.b16 %v836, %v833
    %v945 = vpack.c.b16 %v837, %v834
    %v946 = vpack.c.b16 %v841, %v838
    %v947 = vpack.c.b16 %v842, %v839
    %v948 = vpack.c.b16 %v843, %v840
    %v949 = vpack.c.b16 %v847, %v844
    %v950 = vpack.c.b16 %v848, %v845
    %v951 = vpack.c.b16 %v849, %v846
    %v952 = vpack.c.b16 %v853, %v850
    %v953 = vpack.c.b16 %v854, %v851
    %v954 = vpack.c.b16 %v855, %v852
    %v955 = vpack.c.b16 %v859, %v856
    %v956 = vpack.c.b16 %v860, %v857
    %v957 = vpack.c.b16 %v861, %v858
    %1054 = vmatprep.subr.bf16.mxu0 %v884
    %1055 = vmatpush1.bf16.msra.mxu0 %v883
    %1056 = vmatprep.subr.bf16.mxu0 %v881
    %1057 = vmatpush1.bf16.msra.mxu0 %v880
    %1058 = vmatprep.subr.bf16.mxu0 %v878
    %1059 = vmatpush1.bf16.msra.mxu0 %v877
    %1060 = vmatprep.subr.bf16.mxu0 %v875
    %1061 = vmatpush1.bf16.msra.mxu0 %v874
    %1062 = vmatprep.subr.bf16.mxu0 %v872
    %1063 = vmatpush1.bf16.msra.mxu0 %v871
    %1064 = vmatprep.subr.bf16.mxu0 %v869
    %1065 = vmatpush1.bf16.msra.mxu0 %v868
    %1066 = vmatprep.subr.bf16.mxu0 %v866
    %1067 = vmatpush1.bf16.msra.mxu0 %v865
    %1068 = vmatprep.subr.bf16.mxu0 %v863
    %1069 = vmatpush1.bf16.msra.mxu0 %v862
    %1070 = vmatprep.subr.bf16.mxu0 %v908
    %1071 = vmatpush2.bf16.msra.mxu0 %v907
    %1072 = vmatprep.subr.bf16.mxu0 %v905
    %1073 = vmatpush2.bf16.msra.mxu0 %v904
    %1074 = vmatprep.subr.bf16.mxu0 %v902
    %1075 = vmatpush2.bf16.msra.mxu0 %v901
    %1076 = vmatprep.subr.bf16.mxu0 %v899
    %1077 = vmatpush2.bf16.msra.mxu0 %v898
    %1078 = vmatprep.subr.bf16.mxu0 %v896
    %1079 = vmatpush2.bf16.msra.mxu0 %v895
    %1080 = vmatprep.subr.bf16.mxu0 %v893
    %1081 = vmatpush2.bf16.msra.mxu0 %v892
    %1082 = vmatprep.subr.bf16.mxu0 %v890
    %1083 = vmatpush2.bf16.msra.mxu0 %v889
    %1084 = vmatprep.subr.bf16.mxu0 %v887
    %1085 = vmatpush2.bf16.msra.mxu0 %v886
    %1086 = vmatprep.mubr.bf16.mxu0 %v394
    %1087 = vmatmul.mubr.bf16.gmra.mxu0 %v393
    %v1088 = vpop.f32.mrf.mxu0
    %v1089 = vadd.f32 %v530, %v1088
    %v1090 = vpop.f32.mrf.mxu0
    %v1091 = vadd.f32 %v534, %v1090
    %v1092 = vpop.f32.mrf.mxu0
    %v1093 = vpop.f32.mrf.mxu0
    %1094 = vdwg.mxu0
    %1095 = vmatprep.subr.bf16.mxu0 %v932
    %1096 = vmatpush1.bf16.msra.mxu0 %v931
    %1097 = vmatprep.subr.bf16.mxu0 %v929
    %1098 = vmatpush1.bf16.msra.mxu0 %v928
    %1099 = vmatprep.subr.bf16.mxu0 %v926
    %1100 = vmatpush1.bf16.msra.mxu0 %v925
    %1101 = vmatprep.subr.bf16.mxu0 %v923
    %1102 = vmatpush1.bf16.msra.mxu0 %v922
    %1103 = vmatprep.subr.bf16.mxu0 %v920
    %1104 = vmatpush1.bf16.msra.mxu0 %v919
    %1105 = vmatprep.subr.bf16.mxu0 %v917
    %1106 = vmatpush1.bf16.msra.mxu0 %v916
    %1107 = vmatprep.subr.bf16.mxu0 %v914
    %1108 = vmatpush1.bf16.msra.mxu0 %v913
    %1109 = vmatprep.subr.bf16.mxu0 %v911
    %1110 = vmatpush1.bf16.msra.mxu0 %v910
    %1111 = vmatprep.subr.bf16.mxu0 %v956
    %1112 = vmatpush2.bf16.msra.mxu0 %v955
    %1113 = vmatprep.subr.bf16.mxu0 %v953
    %1114 = vmatpush2.bf16.msra.mxu0 %v952
    %1115 = vmatprep.subr.bf16.mxu0 %v950
    %1116 = vmatpush2.bf16.msra.mxu0 %v949
    %1117 = vmatprep.subr.bf16.mxu0 %v947
    %1118 = vmatpush2.bf16.msra.mxu0 %v946
    %1119 = vmatprep.subr.bf16.mxu0 %v944
    %1120 = vmatpush2.bf16.msra.mxu0 %v943
    %1121 = vmatprep.subr.bf16.mxu0 %v941
    %1122 = vmatpush2.bf16.msra.mxu0 %v940
    %1123 = vmatprep.subr.bf16.mxu0 %v938
    %1124 = vmatpush2.bf16.msra.mxu0 %v937
    %1125 = vmatprep.subr.bf16.mxu0 %v935
    %1126 = vmatpush2.bf16.msra.mxu0 %v934
    %1127 = vmatprep.mubr.bf16.mxu0 %v396
    %1128 = vmatmul.mubr.bf16.gmra.mxu0 %v395
    %v1129 = vpop.f32.mrf.mxu0
    %v1130 = vadd.f32 %v1089, %v1129
    %v1131 = vpop.f32.mrf.mxu0
    %v1132 = vadd.f32 %v1091, %v1131
    %v1133 = vpop.f32.mrf.mxu0
    %v1134 = vpop.f32.mrf.mxu0
    %1135 = vdwg.mxu0
    %1136 = vmatprep.subr.bf16.mxu0 0
    %1137 = vmatpush1.bf16.msra.mxu0 %v885
    %1138 = vmatprep.subr.bf16.mxu0 0
    %1139 = vmatpush1.bf16.msra.mxu0 %v882
    %1140 = vmatprep.subr.bf16.mxu0 0
    %1141 = vmatpush1.bf16.msra.mxu0 %v879
    %1142 = vmatprep.subr.bf16.mxu0 0
    %1143 = vmatpush1.bf16.msra.mxu0 %v876
    %1144 = vmatprep.subr.bf16.mxu0 0
    %1145 = vmatpush1.bf16.msra.mxu0 %v873
    %1146 = vmatprep.subr.bf16.mxu0 0
    %1147 = vmatpush1.bf16.msra.mxu0 %v870
    %1148 = vmatprep.subr.bf16.mxu0 0
    %1149 = vmatpush1.bf16.msra.mxu0 %v867
    %1150 = vmatprep.subr.bf16.mxu0 0
    %1151 = vmatpush1.bf16.msra.mxu0 %v864
    %1152 = vmatprep.subr.bf16.mxu0 0
    %1153 = vmatpush2.bf16.msra.mxu0 %v909
    %1154 = vmatprep.subr.bf16.mxu0 0
    %1155 = vmatpush2.bf16.msra.mxu0 %v906
    %1156 = vmatprep.subr.bf16.mxu0 0
    %1157 = vmatpush2.bf16.msra.mxu0 %v903
    %1158 = vmatprep.subr.bf16.mxu0 0
    %1159 = vmatpush2.bf16.msra.mxu0 %v900
    %1160 = vmatprep.subr.bf16.mxu0 0
    %1161 = vmatpush2.bf16.msra.mxu0 %v897
    %1162 = vmatprep.subr.bf16.mxu0 0
    %1163 = vmatpush2.bf16.msra.mxu0 %v894
    %1164 = vmatprep.subr.bf16.mxu0 0
    %1165 = vmatpush2.bf16.msra.mxu0 %v891
    %1166 = vmatprep.subr.bf16.mxu0 0
    %1167 = vmatpush2.bf16.msra.mxu0 %v888
    %1168 = vmatprep.mubr.bf16.mxu0 %v394
    %1169 = vmatmul.mubr.bf16.gmra.mxu0 %v393
    %v1170 = vpop.f32.mrf.mxu0
    %v1171 = vadd.f32 %v538, %v1170
    %v1172 = vpop.f32.mrf.mxu0
    %v1173 = vpop.f32.mrf.mxu0
    %v1174 = vpop.f32.mrf.mxu0
    %1175 = vdwg.mxu0
    %1176 = vmatprep.subr.bf16.mxu0 0
    %1177 = vmatpush1.bf16.msra.mxu0 %v933
    %1178 = vmatprep.subr.bf16.mxu0 0
    %1179 = vmatpush1.bf16.msra.mxu0 %v930
    %1180 = vmatprep.subr.bf16.mxu0 0
    %1181 = vmatpush1.bf16.msra.mxu0 %v927
    %1182 = vmatprep.subr.bf16.mxu0 0
    %1183 = vmatpush1.bf16.msra.mxu0 %v924
    %1184 = vmatprep.subr.bf16.mxu0 0
    %1185 = vmatpush1.bf16.msra.mxu0 %v921
    %1186 = vmatprep.subr.bf16.mxu0 0
    %1187 = vmatpush1.bf16.msra.mxu0 %v918
    %1188 = vmatprep.subr.bf16.mxu0 0
    %1189 = vmatpush1.bf16.msra.mxu0 %v915
    %1190 = vmatprep.subr.bf16.mxu0 0
    %1191 = vmatpush1.bf16.msra.mxu0 %v912
    %1192 = vmatprep.subr.bf16.mxu0 0
    %1193 = vmatpush2.bf16.msra.mxu0 %v957
    %1194 = vmatprep.subr.bf16.mxu0 0
    %1195 = vmatpush2.bf16.msra.mxu0 %v954
    %1196 = vmatprep.subr.bf16.mxu0 0
    %1197 = vmatpush2.bf16.msra.mxu0 %v951
    %1198 = vmatprep.subr.bf16.mxu0 0
    %1199 = vmatpush2.bf16.msra.mxu0 %v948
    %1200 = vmatprep.subr.bf16.mxu0 0
    %1201 = vmatpush2.bf16.msra.mxu0 %v945
    %1202 = vmatprep.subr.bf16.mxu0 0
    %1203 = vmatpush2.bf16.msra.mxu0 %v942
    %1204 = vmatprep.subr.bf16.mxu0 0
    %1205 = vmatpush2.bf16.msra.mxu0 %v939
    %1206 = vmatprep.subr.bf16.mxu0 0
    %1207 = vmatpush2.bf16.msra.mxu0 %v936
    %1208 = vmatprep.mubr.bf16.mxu0 %v396
    %1209 = vmatmul.mubr.bf16.gmra.mxu0 %v395
    %v1210 = vpop.f32.mrf.mxu0
    %v1211 = vadd.f32 %v1171, %v1210
    %v1212 = vpop.f32.mrf.mxu0
    %v1213 = vpop.f32.mrf.mxu0
    %v1214 = vpop.f32.mrf.mxu0
    %1215 = vdwg.mxu0
    %v1216 = vmax.f32 %v1130, 0.0
    %v1217 = vmax.f32 %v1132, 0.0
    %v1218 = vmax.f32 %v1211, 0.0
    %v1219 = vpack.c.bf16 %v1216, %v1216
    %v1220 = vpack.c.bf16 %v1217, %v1217
    %v1221 = vpack.c.bf16 %v1218, %v1218
    %v1222 = vld [vmem:[#allocation10] sm:$0xf]
    %v1223 = vld [vmem:[#allocation10 + $0x4] sm:$0xf]
    %v1224 = vld [vmem:[#allocation10 + $0x8] sm:$0xf]
    %v1225 = vld [vmem:[#allocation10 + $0xc] sm:$0xf]
    %v1226 = vld [vmem:[#allocation10 + $0x10] sm:$0xf]
    %v1227 = vld [vmem:[#allocation10 + $0x14] sm:$0xf]
    %v1228 = vld [vmem:[#allocation10 + $0x18] sm:$0xf]
    %v1229 = vld [vmem:[#allocation10 + $0x1c] sm:$0xf]
    %v1230 = vld [vmem:[#allocation10 + $0x20] sm:$0xf]
    %v1231 = vld [vmem:[#allocation10 + $0x24] sm:$0xf]
    %v1232 = vld [vmem:[#allocation10 + $0x28] sm:$0xf]
    %v1233 = vld [vmem:[#allocation10 + $0x2c] sm:$0xf]
    %v1234 = vld [vmem:[#allocation10 + $0x30] sm:$0xf]
    %v1235 = vld [vmem:[#allocation10 + $0x34] sm:$0xf]
    %v1236 = vld [vmem:[#allocation10 + $0x38] sm:$0xf]
    %v1237 = vld [vmem:[#allocation10 + $0x3c] sm:$0xf]
    %v1238 = vld [vmem:[#allocation10 + $0x40] sm:$0xf]
    %v1239 = vld [vmem:[#allocation10 + $0x44] sm:$0xf]
    %v1240 = vld [vmem:[#allocation10 + $0x48] sm:$0xf]
    %v1241 = vld [vmem:[#allocation10 + $0x4c] sm:$0xf]
    %v1242 = vld [vmem:[#allocation10 + $0x50] sm:$0xf]
    %v1243 = vld [vmem:[#allocation10 + $0x54] sm:$0xf]
    %v1244 = vld [vmem:[#allocation10 + $0x58] sm:$0xf]
    %v1245 = vld [vmem:[#allocation10 + $0x5c] sm:$0xf]
    %v1246 = vld [vmem:[#allocation10 + $0x60] sm:$0xf]
    %v1247 = vld [vmem:[#allocation10 + $0x64] sm:$0xf]
    %v1248 = vld [vmem:[#allocation10 + $0x68] sm:$0xf]
    %v1249 = vld [vmem:[#allocation10 + $0x6c] sm:$0xf]
    %v1250 = vld [vmem:[#allocation10 + $0x70] sm:$0xf]
    %v1251 = vld [vmem:[#allocation10 + $0x74] sm:$0xf]
    %v1252 = vld [vmem:[#allocation10 + $0x78] sm:$0xf]
    %v1253 = vld [vmem:[#allocation10 + $0x7c] sm:$0xf]
    %v1254 = vld [vmem:[#allocation10 + $0x80] sm:$0xf]
    %v1255 = vld [vmem:[#allocation10 + $0x84] sm:$0xf]
    %v1256 = vld [vmem:[#allocation10 + $0x88] sm:$0xf]
    %v1257 = vld [vmem:[#allocation10 + $0x8c] sm:$0xf]
    %v1258 = vld [vmem:[#allocation10 + $0x90] sm:$0xf]
    %v1259 = vld [vmem:[#allocation10 + $0x94] sm:$0xf]
    %v1260 = vld [vmem:[#allocation10 + $0x98] sm:$0xf]
    %v1261 = vld [vmem:[#allocation10 + $0x9c] sm:$0xf]
    %v1262 = vld [vmem:[#allocation10 + $0xa0] sm:$0xf]
    %v1263 = vld [vmem:[#allocation10 + $0xa4] sm:$0xf]
    %v1264 = vld [vmem:[#allocation10 + $0xa8] sm:$0xf]
    %v1265 = vld [vmem:[#allocation10 + $0xac] sm:$0xf]
    %v1266 = vld [vmem:[#allocation10 + $0xb0] sm:$0xf]
    %v1267 = vld [vmem:[#allocation10 + $0xb4] sm:$0xf]
    %v1268 = vld [vmem:[#allocation10 + $0xb8] sm:$0xf]
    %v1269 = vld [vmem:[#allocation10 + $0xbc] sm:$0xf]
    %v1270 = vld [vmem:[%s6] sm:$0x1]
    %v1272 = vlaneseq
    %v1273 = vshrl.u32 %v1272, 7
    %v1274 = vsub.s32 0, %v1273
    %v1275 = vrot.slane %v1270, %v1274
    %v1325 = vunpack.c.l.b16 %v1222
    %v1326 = vunpack.c.l.b16 %v1223
    %v1327 = vunpack.c.l.b16 %v1224
    %v1328 = vunpack.c.l.b16 %v1225
    %v1329 = vunpack.c.l.b16 %v1226
    %v1330 = vunpack.c.l.b16 %v1227
    %v1331 = vunpack.c.l.b16 %v1228
    %v1332 = vunpack.c.l.b16 %v1229
    %v1333 = vunpack.c.l.b16 %v1230
    %v1334 = vunpack.c.l.b16 %v1231
    %v1335 = vunpack.c.l.b16 %v1232
    %v1336 = vunpack.c.l.b16 %v1233
    %v1337 = vunpack.c.l.b16 %v1234
    %v1338 = vunpack.c.l.b16 %v1235
    %v1339 = vunpack.c.l.b16 %v1236
    %v1340 = vunpack.c.l.b16 %v1237
    %v1341 = vunpack.c.l.b16 %v1238
    %v1342 = vunpack.c.l.b16 %v1239
    %v1343 = vunpack.c.l.b16 %v1240
    %v1344 = vunpack.c.l.b16 %v1241
    %v1345 = vunpack.c.l.b16 %v1242
    %v1346 = vunpack.c.l.b16 %v1243
    %v1347 = vunpack.c.l.b16 %v1244
    %v1348 = vunpack.c.l.b16 %v1245
    %v1349 = vunpack.c.l.b16 %v1246
    %v1350 = vunpack.c.l.b16 %v1247
    %v1351 = vunpack.c.l.b16 %v1248
    %v1352 = vunpack.c.l.b16 %v1249
    %v1353 = vunpack.c.l.b16 %v1250
    %v1354 = vunpack.c.l.b16 %v1251
    %v1355 = vunpack.c.l.b16 %v1252
    %v1356 = vunpack.c.l.b16 %v1253
    %v1357 = vunpack.c.l.b16 %v1254
    %v1358 = vunpack.c.l.b16 %v1255
    %v1359 = vunpack.c.l.b16 %v1256
    %v1360 = vunpack.c.l.b16 %v1257
    %v1361 = vunpack.c.l.b16 %v1258
    %v1362 = vunpack.c.l.b16 %v1259
    %v1363 = vunpack.c.l.b16 %v1260
    %v1364 = vunpack.c.l.b16 %v1261
    %v1365 = vunpack.c.l.b16 %v1262
    %v1366 = vunpack.c.l.b16 %v1263
    %v1367 = vunpack.c.l.b16 %v1264
    %v1368 = vunpack.c.l.b16 %v1265
    %v1369 = vunpack.c.l.b16 %v1266
    %v1370 = vunpack.c.l.b16 %v1267
    %v1371 = vunpack.c.l.b16 %v1268
    %v1372 = vunpack.c.l.b16 %v1269
    %v1373 = vpack.c.b16 %v1326, %v1325
    %v1374 = vpack.c.b16 %v1328, %v1327
    %v1375 = vpack.c.b16 %v1330, %v1329
    %v1376 = vpack.c.b16 %v1332, %v1331
    %v1377 = vpack.c.b16 %v1334, %v1333
    %v1378 = vpack.c.b16 %v1336, %v1335
    %v1379 = vpack.c.b16 %v1338, %v1337
    %v1380 = vpack.c.b16 %v1340, %v1339
    %v1381 = vpack.c.b16 %v1342, %v1341
    %v1382 = vpack.c.b16 %v1344, %v1343
    %v1383 = vpack.c.b16 %v1346, %v1345
    %v1384 = vpack.c.b16 %v1348, %v1347
    %v1385 = vpack.c.b16 %v1350, %v1349
    %v1386 = vpack.c.b16 %v1352, %v1351
    %v1387 = vpack.c.b16 %v1354, %v1353
    %v1388 = vpack.c.b16 %v1356, %v1355
    %v1389 = vpack.c.b16 %v1358, %v1357
    %v1390 = vpack.c.b16 %v1360, %v1359
    %v1391 = vpack.c.b16 %v1362, %v1361
    %v1392 = vpack.c.b16 %v1364, %v1363
    %v1393 = vpack.c.b16 %v1366, %v1365
    %v1394 = vpack.c.b16 %v1368, %v1367
    %v1395 = vpack.c.b16 %v1370, %v1369
    %v1396 = vpack.c.b16 %v1372, %v1371
    %1421 = vmatprep.subr.bf16.mxu0 0
    %1422 = vmatpush1.bf16.msra.mxu0 %v1380
    %1423 = vmatprep.subr.bf16.mxu0 0
    %1424 = vmatpush1.bf16.msra.mxu0 %v1379
    %1425 = vmatprep.subr.bf16.mxu0 0
    %1426 = vmatpush1.bf16.msra.mxu0 %v1378
    %1427 = vmatprep.subr.bf16.mxu0 0
    %1428 = vmatpush1.bf16.msra.mxu0 %v1377
    %1429 = vmatprep.subr.bf16.mxu0 0
    %1430 = vmatpush1.bf16.msra.mxu0 %v1376
    %1431 = vmatprep.subr.bf16.mxu0 0
    %1432 = vmatpush1.bf16.msra.mxu0 %v1375
    %1433 = vmatprep.subr.bf16.mxu0 0
    %1434 = vmatpush1.bf16.msra.mxu0 %v1374
    %1435 = vmatprep.subr.bf16.mxu0 0
    %1436 = vmatpush1.bf16.msra.mxu0 %v1373
    %1437 = vmatprep.subr.bf16.mxu0 0
    %1438 = vmatpush2.bf16.msra.mxu0 %v1388
    %1439 = vmatprep.subr.bf16.mxu0 0
    %1440 = vmatpush2.bf16.msra.mxu0 %v1387
    %1441 = vmatprep.subr.bf16.mxu0 0
    %1442 = vmatpush2.bf16.msra.mxu0 %v1386
    %1443 = vmatprep.subr.bf16.mxu0 0
    %1444 = vmatpush2.bf16.msra.mxu0 %v1385
    %1445 = vmatprep.subr.bf16.mxu0 0
    %1446 = vmatpush2.bf16.msra.mxu0 %v1384
    %1447 = vmatprep.subr.bf16.mxu0 0
    %1448 = vmatpush2.bf16.msra.mxu0 %v1383
    %1449 = vmatprep.subr.bf16.mxu0 0
    %1450 = vmatpush2.bf16.msra.mxu0 %v1382
    %1451 = vmatprep.subr.bf16.mxu0 0
    %1452 = vmatpush2.bf16.msra.mxu0 %v1381
    %1453 = vmatprep.mubr.bf16.mxu0 %v1220
    %1454 = vmatmul.mubr.bf16.gmra.mxu0 %v1219
    %v1455 = vpop.f32.mrf.mxu0
    %v1456 = vadd.f32 %v1275, %v1455
    %v1457 = vpop.f32.mrf.mxu0
    %v1458 = vpop.f32.mrf.mxu0
    %v1459 = vpop.f32.mrf.mxu0
    %1460 = vdwg.mxu0
    %1461 = vmatprep.subr.bf16.mxu0 0
    %1462 = vmatpush1.bf16.msra.mxu0 %v1396
    %1463 = vmatprep.subr.bf16.mxu0 0
    %1464 = vmatpush1.bf16.msra.mxu0 %v1395
    %1465 = vmatprep.subr.bf16.mxu0 0
    %1466 = vmatpush1.bf16.msra.mxu0 %v1394
    %1467 = vmatprep.subr.bf16.mxu0 0
    %1468 = vmatpush1.bf16.msra.mxu0 %v1393
    %1469 = vmatprep.subr.bf16.mxu0 0
    %1470 = vmatpush1.bf16.msra.mxu0 %v1392
    %1471 = vmatprep.subr.bf16.mxu0 0
    %1472 = vmatpush1.bf16.msra.mxu0 %v1391
    %1473 = vmatprep.subr.bf16.mxu0 0
    %1474 = vmatpush1.bf16.msra.mxu0 %v1390
    %1475 = vmatprep.subr.bf16.mxu0 0
    %1476 = vmatpush1.bf16.msra.mxu0 %v1389
    %1477 = vmatprep.subr.bf16.mxu0 0
    %1478 = vmatpush2.bf16.msra.mxu0 0
    %1479 = vmatprep.subr.bf16.mxu0 0
    %1480 = vmatpush2.bf16.msra.mxu0 0
    %1481 = vmatprep.subr.bf16.mxu0 0
    %1482 = vmatpush2.bf16.msra.mxu0 0
    %1483 = vmatprep.subr.bf16.mxu0 0
    %1484 = vmatpush2.bf16.msra.mxu0 0
    %1485 = vmatprep.subr.bf16.mxu0 0
    %1486 = vmatpush2.bf16.msra.mxu0 0
    %1487 = vmatprep.subr.bf16.mxu0 0
    %1488 = vmatpush2.bf16.msra.mxu0 0
    %1489 = vmatprep.subr.bf16.mxu0 0
    %1490 = vmatpush2.bf16.msra.mxu0 0
    %1491 = vmatprep.subr.bf16.mxu0 0
    %1492 = vmatpush2.bf16.msra.mxu0 0
    %1493 = vmatprep.mubr.bf16.mxu0 0
    %1494 = vmatmul.mubr.bf16.gmra.mxu0 %v1221
    %v1495 = vpop.f32.mrf.mxu0
    %v1496 = vadd.f32 %v1456, %v1495
    %v1497 = vpop.f32.mrf.mxu0
    %v1498 = vpop.f32.mrf.mxu0
    %v1499 = vpop.f32.mrf.mxu0
    %1500 = vdwg.mxu0
    %v1501 = vtanh.pop %v1496
    %1502 = vst [vmem:[#allocation11] sm:$0xff] %v1501
    // Predicated region
    $region50: #{tpu_custom_call.1} parent=1 // pred_check
      _
    $region51: #{tpu_custom_call.1} parent=1 // pred_check_branch
      %1504 = sbr.rel (0) target = $region53
    $region52: #{tpu_custom_call.1} parent=1 // pred_region
      %s1506 = ssub.s32 128, 128
      %1507 = vsyncadd [#allocation4], %s1506
      %s1509 = sshll.u32 [#allocation11], 4
      %s1510 = int_to_ptr.vmem [resolvable:$true] %s1509
      %1512 = dma.vmem_to_hbm [thread:$0]  %s1510, 128, %s7, [#allocation4]
    $region53: #{tpu_custom_call.1} parent=1 // pred_fallthru
      _
    // Predicated region
    $region54: #{tpu_custom_call.1} parent=1 // pred_check
      _
    $region55: #{tpu_custom_call.1} parent=1 // pred_check_branch
      %1514 = sbr.rel (0) target = $region57
    $region56: #{tpu_custom_call.1} parent=1 // pred_region
      %1515 = dma.done [#allocation4], 128
    $region57: #{tpu_custom_call.1} parent=1 // pred_fallthru
      _
    %1516 = vsyncpa [#allocation3], 1
    %1517 = vsyncpa [#allocation6], 1
    %1518 = vsyncpa [#allocation9], 1
    %1519 = vsyncpa [#allocation4], 1

</llo_original>
